<compile_context>
chip_gen: v6e
topology: v6e:2x2x1
jax: 0.10.0
libtpu: 0.0.40
codegen_flags: <defaults>
</compile_context>

<pallas_src>
import functools

import jax
import jax.numpy as jnp
from jax.experimental import pallas as pl
from jax.experimental.pallas import tpu as pltpu


def _dwsep_kernel(x_ref, wdw_ref, wpw_ref, bf_ref, out_ref, *, k, L_valid, masked):
    # x_ref  : (Bt, C, Lb)   native NCL batch-row group, Lb % 128 == 0
    # wdw_ref: (C, k)        depthwise weights (PyTorch (C,1,k) squeezed)
    # wpw_ref: (O, C)        pointwise weights (PyTorch (O,C,1) squeezed)
    # bf_ref : (O, 1) f32    fused bias  (W_pw @ b_dw + b_pw)
    # out_ref: (Bt, O, Lb)
    Bt, C, Lb = x_ref.shape
    pad = k // 2
    wdw = wdw_ref[...]          # input dtype (bf16 stays bf16 on v6e/v7x VALUs)
    wpw = wpw_ref[...]
    bias = bf_ref[...]          # f32

    # Tap validity masks, computed once per grid step on a single sublane:
    # single compare per tap, no integer mod.  Only needed on the unpadded
    # (L % 128 == 0) path -- the padded path reads zeros outside the row.
    masks = {}
    if masked:
        pos = jax.lax.broadcasted_iota(jnp.int32, (1, Lb), 1)
        for t in range(k):
            s = t - pad
            if s > 0:
                masks[t] = pos < (L_valid - s)
            elif s < 0:
                masks[t] = pos >= (-s)

    for b in range(Bt):         # Bt <= 8: small static unroll over whole rows
        xb = x_ref[b]           # (C, Lb), input dtype
        acc = jnp.zeros((C, Lb), jnp.float32)
        for t in range(k):      # k is a small static int -> fully unrolled
            s = t - pad
            # shifted[..., p] = xb[..., (p + s) mod Lb]: lane rotation on the
            # XLU -- a free slot next to the busy VPU.
            tap = xb if s == 0 else pltpu.roll(xb, shift=(-s) % Lb, axis=1)
            if masked and s != 0:
                tap = jnp.where(masks[t], tap, 0)
            # Input-dtype multiply, f32 accumulate (no per-tap full-tile casts
            # beyond the unavoidable widen of the product; a no-op for f32).
            acc = acc + (wdw[:, t:t + 1] * tap).astype(jnp.float32)

        # Pointwise (1x1) conv on the MXU: (O,C) x (C,Lb), N = Lb lanes per dot,
        # operands in the input dtype, f32 accumulate.
        out = jnp.dot(wpw, acc.astype(xb.dtype),
                      preferred_element_type=jnp.float32)
        out_ref[b] = (out + bias).astype(out_ref.dtype)


def _vmem_config():
    """(per-step tile budget, vmem_limit_bytes), generation aware."""
    try:
        phys = pltpu.get_tpu_info().vmem_capacity_bytes
    except Exception:
        phys = 64 * 1024 * 1024                     # assume the smallest (v7x)
    if phys >= 100 * 1024 * 1024:                   # v5e / v6e: 128 MiB physical
        return 48 * 1024 * 1024, 96 * 1024 * 1024
    return 24 * 1024 * 1024, 40 * 1024 * 1024       # v7x: 64 MiB physical


def _pick_batch_tile(B, C, O, Lb, itemsize, budget, max_bt=8):
    """Whole batch rows per grid step (divides B, fits VMEM, keeps >=2 steps)."""
    # Per-row footprint: double-buffered in/out blocks + f32 temporaries
    # (accumulator, rolled tap, dot result).
    per_row = Lb * (2 * (C + O) * itemsize + 4 * (2 * C + O))
    cap = min(max_bt, B // 2) if B >= 2 else 1      # >=2 grid steps for v7x's 2 TCs
    best = 1
    for bt in range(1, max(cap, 1) + 1):
        if B % bt == 0 and bt * per_row <= budget:
            best = bt
    return best
    # TODO(synk): intra-row L tiling (with a k//2 halo) for rows too long for the
    # budget, and for B == 1 on the 2-TensorCore parts.


@functools.partial(jax.jit, static_argnums=5)
def depthwise_separable_conv(x, w_dw, b_dw, w_pw, b_pw, k):
    """x: (B, C, L) NCL, like PyTorch Conv1d.
    w_dw: (C, 1, k), b_dw: (C,), w_pw: (O, C, 1), b_pw: (O,).  Odd k only."""
    if k % 2 != 1:
        raise ValueError("only odd k reproduces PyTorch Conv1d(padding=k//2) length")
    B, C, L = x.shape
    O = w_pw.shape[0]
    pad = k // 2

    wdw2 = w_dw.reshape(C, k).astype(x.dtype)
    wpw2 = w_pw.reshape(O, C).astype(x.dtype)
    # Fuse the depthwise bias into the pointwise bias (exact same math):
    # W_pw @ (y + b_dw) + b_pw == W_pw @ y + (W_pw @ b_dw + b_pw)
    b_fused = (wpw2.astype(jnp.float32) @ b_dw.astype(jnp.float32).reshape(C, 1)
               + b_pw.astype(jnp.float32).reshape(O, 1))

    if L % 128 == 0:
        # Lane-aligned rows: consume x as-is, mask the k//2 halo in-kernel.
        x_in, Lb, masked = x, L, True
    else:
        # Small / unaligned rows: zero-pad each row to a 128 multiple that also
        # covers the k//2 halo, so no in-kernel masks are needed at all.
        Lb = ((L + pad + 127) // 128) * 128
        x_in = jnp.pad(x, ((0, 0), (0, 0), (0, Lb - L)))
        masked = False

    tile_budget, vmem_limit = _vmem_config()
    Bt = _pick_batch_tile(B, C, O, Lb, jnp.dtype(x.dtype).itemsize, tile_budget)

    kernel = functools.partial(_dwsep_kernel, k=k, L_valid=L, masked=masked)
    out = pl.pallas_call(
        kernel,
        out_shape=jax.ShapeDtypeStruct((B, O, Lb), x.dtype),
        grid=(B // Bt,),
        in_specs=[
            pl.BlockSpec((Bt, C, Lb), lambda n: (n, 0, 0)),  # native NCL row group
            pl.BlockSpec((C, k), lambda n: (0, 0)),          # constant block idx
            pl.BlockSpec((O, C), lambda n: (0, 0)),
            pl.BlockSpec((O, 1), lambda n: (0, 0)),
        ],
        out_specs=pl.BlockSpec((Bt, O, Lb), lambda n: (n, 0, 0)),
        compiler_params=pltpu.CompilerParams(
            dimension_semantics=("parallel",),
            vmem_limit_bytes=vmem_limit,
        ),
    )(x_in, wdw2, wpw2, b_fused)

    return out if masked else out[:, :, :L]


def _reference(x, w_dw, b_dw, w_pw, b_pw, k):
    # Pure-JAX reference matching PyTorch Conv1d(groups=C, padding=k//2) -> Conv1d(1x1).
    B, C, L = x.shape
    pad = k // 2
    xp = jnp.pad(x, ((0, 0), (0, 0), (pad, pad)))
    y = sum(w_dw[None, :, 0, t:t + 1] * xp[:, :, t:t + L] for t in range(k))
    y = y + b_dw[None, :, None]
    return jnp.einsum("oc,bcl->bol", w_pw[:, :, 0], y) + b_pw[None, :, None]


if __name__ == "__main__":
    # Synthetic deterministic parameters (the original module loads .pkl checkpoints;
    # no file I/O here, so weights are generated in-script).
    key = jax.random.PRNGKey(0)

    def make_case(case_key, B, C, O, L, k, dtype=jnp.float32):
        k_x, k_wd, k_bd, k_wp, k_bp = jax.random.split(case_key, 5)
        x = jax.random.normal(k_x, (B, C, L), dtype=dtype)
        w_dw = jax.random.normal(k_wd, (C, 1, k), dtype=dtype) * 0.1
        b_dw = jax.random.normal(k_bd, (C,), dtype=dtype) * 0.1
        w_pw = jax.random.normal(k_wp, (O, C, 1), dtype=dtype) * 0.1
        b_pw = jax.random.normal(k_bp, (O,), dtype=dtype) * 0.1
        return x, w_dw, b_dw, w_pw, b_pw

    k1, k2, k3 = jax.random.split(key, 3)

    # k=3 branch: small unaligned L -> zero-padded, mask-free path.
    args3 = make_case(k1, B=2, C=8, O=16, L=16, k=3)
    out3 = jax.block_until_ready(depthwise_separable_conv(*args3, 3))
    ref3 = _reference(*args3, 3)
    assert out3.shape == (2, 16, 16)
    assert jnp.allclose(out3, ref3, atol=1e-5, rtol=1e-5), "mismatch vs reference (k=3)"

    # k=5 branch: lane-aligned L -> native layout, masked-halo path, Bt=2 per step.
    args5 = make_case(k2, B=4, C=16, O=32, L=128, k=5)
    out5 = jax.block_until_ready(depthwise_separable_conv(*args5, 5))
    ref5 = _reference(*args5, 5)
    assert out5.shape == (4, 32, 128)
    assert jnp.allclose(out5, ref5, atol=1e-4, rtol=1e-4), "mismatch vs reference (k=5)"

    # k=7 branch: odd batch, unaligned L -> padded path, Bt=1, 3 grid steps.
    args7 = make_case(k3, B=3, C=8, O=8, L=20, k=7)
    out7 = jax.block_until_ready(depthwise_separable_conv(*args7, 7))
    ref7 = _reference(*args7, 7)
    assert out7.shape == (3, 8, 20)
    assert jnp.allclose(out7, ref7, atol=1e-4, rtol=1e-4), "mismatch vs reference (k=7)"

    print("KERNEL_OK")
</pallas_src>

<mosaic_0001>
module attributes {stable_mosaic.version = 11 : i64} {
  func.func @_dwsep_kernel(%arg0: i32, %arg1: memref<1x8x128xf32, #tpu.memory_space<vmem>>, %arg2: memref<8x3xf32, #tpu.memory_space<vmem>>, %arg3: memref<16x8xf32, #tpu.memory_space<vmem>>, %arg4: memref<16x1xf32, #tpu.memory_space<vmem>>, %arg5: memref<1x16x128xf32, #tpu.memory_space<vmem>>) attributes {dimension_semantics = [#tpu.dimension_semantics<parallel>], iteration_bounds = array<i64: 2>, scalar_prefetch = 0 : i64, scratch_operands = 0 : i64, tpu.core_type = #tpu.core_type<tc>, window_params = [{transform_indices = @transform_0, window_bounds = array<i64: 1, 8, 128>}, {pipeline_mode = #tpu.pipeline_mode<synchronous>, transform_indices = @transform_1, window_bounds = array<i64: 8, 3>}, {pipeline_mode = #tpu.pipeline_mode<synchronous>, transform_indices = @transform_2, window_bounds = array<i64: 16, 8>}, {pipeline_mode = #tpu.pipeline_mode<synchronous>, transform_indices = @transform_3, window_bounds = array<i64: 16, 1>}, {transform_indices = @transform_4, window_bounds = array<i64: 1, 16, 128>}]} {
    %c0 = arith.constant 0 : index
    %c0_0 = arith.constant 0 : index
    %0 = vector.load %arg2[%c0, %c0_0] : memref<8x3xf32, #tpu.memory_space<vmem>>, vector<8x3xf32>
    %c0_1 = arith.constant 0 : index
    %c0_2 = arith.constant 0 : index
    %1 = vector.load %arg3[%c0_1, %c0_2] : memref<16x8xf32, #tpu.memory_space<vmem>>, vector<16x8xf32>
    %c0_3 = arith.constant 0 : index
    %c0_4 = arith.constant 0 : index
    %2 = vector.load %arg4[%c0_3, %c0_4] : memref<16x1xf32, #tpu.memory_space<vmem>>, vector<16x1xf32>
    %c0_5 = arith.constant 0 : index
    %c0_6 = arith.constant 0 : index
    %c0_7 = arith.constant 0 : index
    %3 = vector.load %arg1[%c0_5, %c0_6, %c0_7] : memref<1x8x128xf32, #tpu.memory_space<vmem>>, vector<1x8x128xf32>
    %4 = vector.shape_cast %3 : vector<1x8x128xf32> to vector<8x128xf32>
    %cst = arith.constant 0.000000e+00 : f32
    %5 = vector.broadcast %cst : f32 to vector<8x128xf32>
    %c1_i32 = arith.constant 1 : i32
    %6 = tpu.dynamic_rotate %4 by %c1_i32 dim 1 : vector<8x128xf32>, i32 -> vector<8x128xf32>
    %7 = vector.extract_strided_slice %0 {offsets = [0, 0], sizes = [8, 1], strides = [1, 1]} : vector<8x3xf32> to vector<8x1xf32>
    %8 = vector.broadcast %7 : vector<8x1xf32> to vector<8x128xf32>
    %9 = arith.mulf %8, %6 : vector<8x128xf32>
    %10 = arith.addf %5, %9 : vector<8x128xf32>
    %11 = vector.extract_strided_slice %0 {offsets = [0, 1], sizes = [8, 1], strides = [1, 1]} : vector<8x3xf32> to vector<8x1xf32>
    %12 = vector.broadcast %11 : vector<8x1xf32> to vector<8x128xf32>
    %13 = arith.mulf %12, %4 : vector<8x128xf32>
    %14 = arith.addf %10, %13 : vector<8x128xf32>
    %c127_i32 = arith.constant 127 : i32
    %15 = tpu.dynamic_rotate %4 by %c127_i32 dim 1 : vector<8x128xf32>, i32 -> vector<8x128xf32>
    %16 = vector.extract_strided_slice %0 {offsets = [0, 2], sizes = [8, 1], strides = [1, 1]} : vector<8x3xf32> to vector<8x1xf32>
    %17 = vector.broadcast %16 : vector<8x1xf32> to vector<8x128xf32>
    %18 = arith.mulf %17, %15 : vector<8x128xf32>
    %19 = arith.addf %14, %18 : vector<8x128xf32>
    %cst_8 = arith.constant dense<0.000000e+00> : vector<16x128xf32>
    %20 = tpu.matmul %1, %19, %cst_8 {dimension_numbers = #tpu.dot_dimension_numbers<[1], [0], [0], [1], [0, 0, 1, 1], [], []>} : vector<16x8xf32>, vector<8x128xf32>, vector<16x128xf32> -> vector<16x128xf32>
    %21 = vector.broadcast %2 : vector<16x1xf32> to vector<16x128xf32>
    %22 = arith.addf %20, %21 : vector<16x128xf32>
    %c0_9 = arith.constant 0 : index
    %c0_10 = arith.constant 0 : index
    %c0_11 = arith.constant 0 : index
    %23 = vector.load %arg5[%c0_9, %c0_10, %c0_11] : memref<1x16x128xf32, #tpu.memory_space<vmem>>, vector<1x16x128xf32>
    %24 = vector.shape_cast %23 : vector<1x16x128xf32> to vector<16x128xf32>
    %25 = vector.shape_cast %22 : vector<16x128xf32> to vector<1x16x128xf32>
    tpu.vector_store %arg5[%c0_9, %c0_10, %c0_11], %25 {strides = array<i32>} : memref<1x16x128xf32, #tpu.memory_space<vmem>>, vector<1x16x128xf32>,
    return
  }
  func.func @transform_0(%arg0: i32) -> (i32, i32, i32) {
    %c0_i32 = arith.constant 0 : i32
    %c0_i32_0 = arith.constant 0 : i32
    %c0_i32_1 = arith.constant 0 : i32
    return %arg0, %c0_i32, %c0_i32_0 : i32, i32, i32
  }
  func.func @transform_1(%arg0: i32) -> (i32, i32) {
    %c0_i32 = arith.constant 0 : i32
    %c0_i32_0 = arith.constant 0 : i32
    %c0_i32_1 = arith.constant 0 : i32
    return %c0_i32, %c0_i32_0 : i32, i32
  }
  func.func @transform_2(%arg0: i32) -> (i32, i32) {
    %c0_i32 = arith.constant 0 : i32
    %c0_i32_0 = arith.constant 0 : i32
    %c0_i32_1 = arith.constant 0 : i32
    return %c0_i32, %c0_i32_0 : i32, i32
  }
  func.func @transform_3(%arg0: i32) -> (i32, i32) {
    %c0_i32 = arith.constant 0 : i32
    %c0_i32_0 = arith.constant 0 : i32
    %c0_i32_1 = arith.constant 0 : i32
    return %c0_i32, %c0_i32_0 : i32, i32
  }
  func.func @transform_4(%arg0: i32) -> (i32, i32, i32) {
    %c0_i32 = arith.constant 0 : i32
    %c0_i32_0 = arith.constant 0 : i32
    %c0_i32_1 = arith.constant 0 : i32
    return %arg0, %c0_i32, %c0_i32_0 : i32, i32, i32
  }
}

</mosaic_0001>

<llo_original>
// kernel: depthwise_separable_conv.1
$region0: #{depthwise_separable_conv.1}
  #allocation0 [shape = 'u32[]', space=smem, size = 0x4, offset = 0x4, fixed_abs, tag = 'smem constant byte address 0x4 - core index']
  #allocation1 [shape = 'u32[144,128]{1,0:T(1,128)}', space=vmem, size = 0x12000, scoped, tag = 'internal scratch']
  %s0 = inlined_call_operand.vmem [shape: f32[2,8,128], index: 0, kind: input, shape index: {}]
  %s1 = inlined_call_operand.vmem [shape: f32[8,3], index: 1, kind: input, shape index: {}]
  %s2 = inlined_call_operand.vmem [shape: f32[16,8], index: 2, kind: input, shape index: {}]
  %s3 = inlined_call_operand.vmem [shape: f32[16,1], index: 3, kind: input, shape index: {}]
  %s4 = inlined_call_operand.hbm [shape: f32[2,16,128], index: 4, kind: output, shape index: {}]
  %s5 = sld [smem:[#allocation0]]
  $region49: #{depthwise_separable_conv.1} parent=0
    _
  %s7 = ssub.s32 1, %s5
  %s8 = scalar_select 0, %s7, %s5
  $region1: #{depthwise_separable_conv.1} parent=0
    #allocation2 [shape = 'u8[16384]{0}', space=vmem, size = 0x4000, scoped, tag = 'output window, operand 0']
    #allocation3 [shape = 's32[2]{0}', space=sflag, size = 0x8, scoped, tag = 'scoped memory for depthwise_separable_conv.1']
    %9 = vsyncpa [#allocation3], 0
    %s10 = scalar_lea.sflag [#allocation3], 1
    %11 = vsyncpa %s10, 0
    loop: start=0, step=1, limit=4
    $region2: #{depthwise_separable_conv.1} parent=1 // loop_pre_header
      _
    $region3: #{depthwise_separable_conv.1} parent=1 // loop_header
      %s13 = sphi 0, %s17
      %p14 = scmp.ge.s32.totalorder %s13, 4
      %s23 = sphi 0, %s25
      %s26 = sphi 0, %s23
      %s27 = sphi 0, %s26
      %s43 = sphi 0, %s27
      %s47 = sphi 0, %s47
      %s49 = sphi 0, %s47
      %s50 = sphi 0, %s49
      %s64 = sphi 0, %s50
      %s68 = sphi 0, %s68
      %s70 = sphi 0, %s68
      %s71 = sphi 0, %s70
      %s85 = sphi 0, %s71
      %s89 = sphi 0, %s89
      %s91 = sphi 0, %s89
      %s92 = sphi 0, %s91
      %s106 = sphi 0, %s92
      %s112 = sphi 0, %s114
      %s115 = sphi 0, %s112
      %s116 = sphi 0, %s115
      %s132 = sphi 0, %s116
    $region4: #{depthwise_separable_conv.1} parent=1 // loop_header_branch
      %16 = sbr.rel (%p14) target = $region8
    $region5: #{depthwise_separable_conv.1} parent=1 // loop_body
      %s18 = ssub.s32 %s13, 1
      %s19 = ssub.s32 %s13, 2
      %s20 = sadd.s32 %s13, 1
      %s21 = ssub.s32 %s13, %s20
      %p22 = scmp.eq.s32.totalorder %s21, 0
      %s24 = sadd.s32 %s23, 1
      %s25 = scalar_select %p22, %s23, %s24
      %p28 = pneg %p22
      %p29 = scmp.eq.s32.totalorder %s13, 1
      %p30 = por %p28, %p29
      %p31 = scmp.ne.s32.totalorder %s23, %s26
      %p32 = scmp.eq.s32.totalorder %s13, 0
      %p33 = por %p31, %p32
      %p34 = scmp.ne.s32.totalorder %s23, %s26
      %p35 = scmp.eq.s32.totalorder %s18, 1
      %p36 = por %p34, %p35
      %p37 = scmp.ne.s32.totalorder %s26, %s27
      %p38 = scmp.eq.s32.totalorder %s18, 0
      %p39 = por %p37, %p38
      %p40 = scmp.ne.s32.totalorder %s26, %s27
      %p41 = scmp.eq.s32.totalorder %s19, 1
      %p42 = por %p40, %p41
      %p44 = scmp.ne.s32.totalorder %s27, %s43
      %p45 = scmp.eq.s32.totalorder %s19, 0
      %p46 = por %p44, %p45
      %s48 = sadd.s32 %s47, 1
      %p51 = scmp.eq.s32.totalorder %s13, 1
      %p52 = scmp.ne.s32.totalorder %s47, %s49
      %p53 = scmp.eq.s32.totalorder %s13, 0
      %p54 = por %p52, %p53
      %p55 = scmp.ne.s32.totalorder %s47, %s49
      %p56 = scmp.eq.s32.totalorder %s18, 1
      %p57 = por %p55, %p56
      %p58 = scmp.ne.s32.totalorder %s49, %s50
      %p59 = scmp.eq.s32.totalorder %s18, 0
      %p60 = por %p58, %p59
      %p61 = scmp.ne.s32.totalorder %s49, %s50
      %p62 = scmp.eq.s32.totalorder %s19, 1
      %p63 = por %p61, %p62
      %p65 = scmp.ne.s32.totalorder %s50, %s64
      %p66 = scmp.eq.s32.totalorder %s19, 0
      %p67 = por %p65, %p66
      %s69 = sadd.s32 %s68, 1
      %p72 = scmp.eq.s32.totalorder %s13, 1
      %p73 = scmp.ne.s32.totalorder %s68, %s70
      %p74 = scmp.eq.s32.totalorder %s13, 0
      %p75 = por %p73, %p74
      %p76 = scmp.ne.s32.totalorder %s68, %s70
      %p77 = scmp.eq.s32.totalorder %s18, 1
      %p78 = por %p76, %p77
      %p79 = scmp.ne.s32.totalorder %s70, %s71
      %p80 = scmp.eq.s32.totalorder %s18, 0
      %p81 = por %p79, %p80
      %p82 = scmp.ne.s32.totalorder %s70, %s71
      %p83 = scmp.eq.s32.totalorder %s19, 1
      %p84 = por %p82, %p83
      %p86 = scmp.ne.s32.totalorder %s71, %s85
      %p87 = scmp.eq.s32.totalorder %s19, 0
      %p88 = por %p86, %p87
      %s90 = sadd.s32 %s89, 1
      %p93 = scmp.eq.s32.totalorder %s13, 1
      %p94 = scmp.ne.s32.totalorder %s89, %s91
      %p95 = scmp.eq.s32.totalorder %s13, 0
      %p96 = por %p94, %p95
      %p97 = scmp.ne.s32.totalorder %s89, %s91
      %p98 = scmp.eq.s32.totalorder %s18, 1
      %p99 = por %p97, %p98
      %p100 = scmp.ne.s32.totalorder %s91, %s92
      %p101 = scmp.eq.s32.totalorder %s18, 0
      %p102 = por %p100, %p101
      %p103 = scmp.ne.s32.totalorder %s91, %s92
      %p104 = scmp.eq.s32.totalorder %s19, 1
      %p105 = por %p103, %p104
      %p107 = scmp.ne.s32.totalorder %s92, %s106
      %p108 = scmp.eq.s32.totalorder %s19, 0
      %p109 = por %p107, %p108
      %s110 = ssub.s32 %s13, %s20
      %p111 = scmp.eq.s32.totalorder %s110, 0
      %s113 = sadd.s32 %s112, 1
      %s114 = scalar_select %p111, %s112, %s113
      %p117 = pneg %p111
      %p118 = scmp.eq.s32.totalorder %s13, 1
      %p119 = por %p117, %p118
      %p120 = scmp.ne.s32.totalorder %s112, %s115
      %p121 = scmp.eq.s32.totalorder %s13, 0
      %p122 = por %p120, %p121
      %p123 = scmp.ne.s32.totalorder %s112, %s115
      %p124 = scmp.eq.s32.totalorder %s18, 1
      %p125 = por %p123, %p124
      %p126 = scmp.ne.s32.totalorder %s115, %s116
      %p127 = scmp.eq.s32.totalorder %s18, 0
      %p128 = por %p126, %p127
      %p129 = scmp.ne.s32.totalorder %s115, %s116
      %p130 = scmp.eq.s32.totalorder %s19, 1
      %p131 = por %p129, %p130
      %p133 = scmp.ne.s32.totalorder %s116, %s132
      %p134 = scmp.eq.s32.totalorder %s19, 0
      %p135 = por %p133, %p134
      %p136 = scmp.le.s32.totalorder 1, %s13
      %p137 = scmp.lt.s32.totalorder %s13, 3
      %p138 = pnand %p136, %p137
      %p139 = pneg %p138
      // Predicated region
      $region9: #{depthwise_separable_conv.1} parent=5 // pred_check
        _
      $region10: #{depthwise_separable_conv.1} parent=5 // pred_check_branch
        %141 = sbr.rel (%p138) target = $region12
      $region11: #{depthwise_separable_conv.1} parent=5 // pred_region
        %s142 = ssub.s32 %s13, 1
        // Predicated region
        $region13: #{depthwise_separable_conv.1} parent=11 // pred_check
          %p143 = pneg %p60
        $region14: #{depthwise_separable_conv.1} parent=11 // pred_check_branch
          %145 = sbr.rel (%p143) target = $region16
        $region15: #{depthwise_separable_conv.1} parent=11 // pred_region
          _
        $region16: #{depthwise_separable_conv.1} parent=11 // pred_fallthru
          _
        // Predicated region
        $region17: #{depthwise_separable_conv.1} parent=11 // pred_check
          %p146 = pneg %p81
        $region18: #{depthwise_separable_conv.1} parent=11 // pred_check_branch
          %148 = sbr.rel (%p146) target = $region20
        $region19: #{depthwise_separable_conv.1} parent=11 // pred_region
          _
        $region20: #{depthwise_separable_conv.1} parent=11 // pred_fallthru
          _
        // Predicated region
        $region21: #{depthwise_separable_conv.1} parent=11 // pred_check
          %p149 = pneg %p102
        $region22: #{depthwise_separable_conv.1} parent=11 // pred_check_branch
          %151 = sbr.rel (%p149) target = $region24
        $region23: #{depthwise_separable_conv.1} parent=11 // pred_region
          _
        $region24: #{depthwise_separable_conv.1} parent=11 // pred_fallthru
          _
      $region12: #{depthwise_separable_conv.1} parent=5 // pred_fallthru
        _
      %p152 = scmp.lt.s32.totalorder %s13, 2
      // Predicated region
      $region25: #{depthwise_separable_conv.1} parent=5 // pred_check
        %p153 = pneg %p152
      $region26: #{depthwise_separable_conv.1} parent=5 // pred_check_branch
        %155 = sbr.rel (%p153) target = $region28
      $region27: #{depthwise_separable_conv.1} parent=5 // pred_region
        // Predicated region
        $region29: #{depthwise_separable_conv.1} parent=27 // pred_check
          %p156 = pneg %p33
        $region30: #{depthwise_separable_conv.1} parent=27 // pred_check_branch
          %158 = sbr.rel (%p156) target = $region32
        $region31: #{depthwise_separable_conv.1} parent=27 // pred_region
          %p159 = scmp.lt.s32.totalorder %s13, 1
          %s160 = scalar_select %p159, %s13, 1
          %s161 = smul.addr %s160, 8
          %s162 = scalar_lea.vmem %s0, %s161
        $region32: #{depthwise_separable_conv.1} parent=27 // pred_fallthru
          _
      $region28: #{depthwise_separable_conv.1} parent=5 // pred_fallthru
        _
      %p163 = scmp.le.s32.totalorder 1, %s13
      %p164 = scmp.lt.s32.totalorder %s13, 3
      %p165 = pnand %p163, %p164
      %p166 = pneg %p165
      // Predicated region
      $region33: #{depthwise_separable_conv.1} parent=5 // pred_check
        _
      $region34: #{depthwise_separable_conv.1} parent=5 // pred_check_branch
        %168 = sbr.rel (%p165) target = $region36
      $region35: #{depthwise_separable_conv.1} parent=5 // pred_region
        %s169 = ssub.s32 %s13, 1
        %p170 = scmp.lt.s32.totalorder %s18, 1
        %s171 = scalar_select %p170, %s18, 1
        %s172 = smul.addr %s171, 8
        %s173 = scalar_lea.vmem %s0, %s172
        %p174 = pneg %p39
        %p175 = pneg %p36
        %p176 = pneg %p60
        %p177 = pneg %p57
        %p178 = pneg %p81
        %p179 = pneg %p78
        %p180 = pneg %p102
        %p181 = pneg %p99
        %p182 = pneg %p128
        %p183 = pneg %p125
        %s184 = sand.u32 %s115, 1
        %s185 = scalar_lea.sflag [#allocation3], %s184
        %s186 = sand.u32 %s115, 1
        %s187 = smul.addr %s186, 16
        %s188 = scalar_lea.vmem [#allocation2], %s187
        %p189 = scmp.lt.s32.totalorder %s18, 1
        %s190 = scalar_select %p189, %s18, 1
        %s191 = smul.addr %s190, 8
        %s192 = scalar_lea.vmem %s0, %s191
        %v193 = vld [vmem:[%s1] sm:$0xff]
        %v194 = vld [vmem:[%s2] sm:$0xff]
        %v195 = vld [vmem:[%s2 + $0x8] sm:$0xff]
        %v196 = vld [vmem:[%s3] sm:$0xff]
        %v197 = vld [vmem:[%s3 + $0x8] sm:$0xff]
        %v198 = vld [vmem:[%s192] sm:$0xff]
        %199 = vrot.lane.b32.xlu0 %v198, 1
        %v200 = vpop.permute.xlu0 %199
        %202 = vset.pattern.permute.xlu0 0
        %203 = vperm.xlu0 %202, %v193
        %v204 = vpop.permute.xlu0 %203
        %v206 = vmul.f32 %v204, %v200
        %v207 = vadd.f32 %v206, 0.0
        %208 = vset.pattern.permute.xlu0 1
        %209 = vperm.xlu0 %208, %v193
        %v210 = vpop.permute.xlu0 %209
        %v212 = vmul.f32 %v210, %v198
        %v213 = vadd.f32 %v207, %v212
        %214 = vrot.lane.b32.xlu0 %v198, 127
        %v215 = vpop.permute.xlu0 %214
        %216 = vset.pattern.permute.xlu0 2
        %217 = vperm.xlu0 %216, %v193
        %v218 = vpop.permute.xlu0 %217
        %v220 = vmul.f32 %v218, %v215
        %v221 = vadd.f32 %v213, %v220
        %223 = vset.pattern.permute.xlu0 0
        %224 = vperm.xlu0 %223, %v196
        %v225 = vpop.permute.xlu0 %224
        %228 = vset.pattern.permute.xlu0 0
        %229 = vperm.xlu0 %228, %v197
        %v230 = vpop.permute.xlu0 %229
        %vm232 = vcmask 64512
        %v234 = vsel %vm232, %v194, 0
        %v237 = vsel %vm232, %v195, 0
        %239 = vmatprep.subr.mxu0 0.0
        %240 = vmatpush1.msra.mxu0 0.0
        %241 = vmatprep.subr.mxu0 0.0
        %242 = vmatpush1.msra.mxu0 0.0
        %243 = vmatprep.subr.mxu0 0.0
        %244 = vmatpush1.msra.mxu0 0.0
        %245 = vmatprep.subr.mxu0 0.0
        %246 = vmatpush1.msra.mxu0 0.0
        %247 = vmatprep.subr.mxu0 0.0
        %248 = vmatpush1.msra.mxu0 0.0
        %249 = vmatprep.subr.mxu0 0.0
        %250 = vmatpush1.msra.mxu0 0.0
        %251 = vmatprep.subr.mxu0 0.0
        %252 = vmatpush1.msra.mxu0 0.0
        %253 = vmatprep.subr.mxu0 0.0
        %254 = vmatpush1.msra.mxu0 0.0
        %255 = vmatprep.subr.mxu0 0.0
        %256 = vmatpush1.msra.mxu0 0.0
        %257 = vmatprep.subr.mxu0 0.0
        %258 = vmatpush1.msra.mxu0 0.0
        %259 = vmatprep.subr.mxu0 0.0
        %260 = vmatpush1.msra.mxu0 0.0
        %261 = vmatprep.subr.mxu0 0.0
        %262 = vmatpush1.msra.mxu0 0.0
        %263 = vmatprep.subr.mxu0 0.0
        %264 = vmatpush1.msra.mxu0 0.0
        %265 = vmatprep.subr.mxu0 0.0
        %266 = vmatpush1.msra.mxu0 0.0
        %267 = vmatprep.subr.mxu0 0.0
        %268 = vmatpush1.msra.mxu0 0.0
        %269 = vmatprep.subr.mxu0 0.0
        %270 = vmatpush1.msra.mxu0 %v221
        %271 = vmatprep.subr.mxu0 0.0
        %272 = vmatpush2.msra.mxu0 0.0
        %273 = vmatprep.subr.mxu0 0.0
        %274 = vmatpush2.msra.mxu0 0.0
        %275 = vmatprep.subr.mxu0 0.0
        %276 = vmatpush2.msra.mxu0 0.0
        %277 = vmatprep.subr.mxu0 0.0
        %278 = vmatpush2.msra.mxu0 0.0
        %279 = vmatprep.subr.mxu0 0.0
        %280 = vmatpush2.msra.mxu0 0.0
        %281 = vmatprep.subr.mxu0 0.0
        %282 = vmatpush2.msra.mxu0 0.0
        %283 = vmatprep.subr.mxu0 0.0
        %284 = vmatpush2.msra.mxu0 0.0
        %285 = vmatprep.subr.mxu0 0.0
        %286 = vmatpush2.msra.mxu0 0.0
        %287 = vmatprep.subr.mxu0 0.0
        %288 = vmatpush2.msra.mxu0 0.0
        %289 = vmatprep.subr.mxu0 0.0
        %290 = vmatpush2.msra.mxu0 0.0
        %291 = vmatprep.subr.mxu0 0.0
        %292 = vmatpush2.msra.mxu0 0.0
        %293 = vmatprep.subr.mxu0 0.0
        %294 = vmatpush2.msra.mxu0 0.0
        %295 = vmatprep.subr.mxu0 0.0
        %296 = vmatpush2.msra.mxu0 0.0
        %297 = vmatprep.subr.mxu0 0.0
        %298 = vmatpush2.msra.mxu0 0.0
        %299 = vmatprep.subr.mxu0 0.0
        %300 = vmatpush2.msra.mxu0 0.0
        %301 = vmatprep.subr.mxu0 0.0
        %302 = vmatpush2.msra.mxu0 0.0
        %303 = vmatprep.mubr.f32.mxu0 0.0
        %304 = vmatmul.mubr.f32.gmra.mxu0 %v234
        %v305 = vpop.f32.mrf.mxu0
        %v306 = vadd.f32 %v225, %v305
        %v307 = vpop.f32.mrf.mxu0
        %308 = vmatprep.mubr.f32.mxu0 0.0
        %309 = vmatmul.mubr.f32.gmra.mxu0 %v237
        %v310 = vpop.f32.mrf.mxu0
        %v311 = vadd.f32 %v230, %v310
        %v312 = vpop.f32.mrf.mxu0
        %313 = vdwg.mxu0
        %314 = vst [vmem:[%s188] sm:$0xff] %v306
        %315 = vst [vmem:[%s188 + $0x8] sm:$0xff] %v311
        %s316 = sand.u32 %s115, 1
        %s317 = scalar_lea.sflag [#allocation3], %s316
        %s318 = sand.u32 %s115, 1
        %s319 = smul.addr %s318, 16
        %s320 = scalar_lea.vmem [#allocation2], %s319
        // Predicated region
        $region37: #{depthwise_separable_conv.1} parent=35 // pred_check
          %p321 = pneg %p125
        $region38: #{depthwise_separable_conv.1} parent=35 // pred_check_branch
          %323 = sbr.rel (%p321) target = $region40
        $region39: #{depthwise_separable_conv.1} parent=35 // pred_region
          %s325 = ssub.s32 256, 256
          %326 = vsyncadd %s317, %s325
          %s327 = smul.addr %s18, 2
          %s328 = smul.addr %s327, 128
          %s329 = scalar_lea.hbm %s4, %s328
          %s330 = sshll.u32 %s320, 4
          %s331 = int_to_ptr.vmem [resolvable:$true] %s330
          %336 = dma.vmem_to_hbm [thread:$0]  %s331, 256, %s329, %s317, 128, 128, 8
        $region40: #{depthwise_separable_conv.1} parent=35 // pred_fallthru
          _
      $region36: #{depthwise_separable_conv.1} parent=5 // pred_fallthru
        _
      %p337 = scmp.le.s32.totalorder 2, %s13
      // Predicated region
      $region41: #{depthwise_separable_conv.1} parent=5 // pred_check
        %p338 = pneg %p337
      $region42: #{depthwise_separable_conv.1} parent=5 // pred_check_branch
        %340 = sbr.rel (%p338) target = $region44
      $region43: #{depthwise_separable_conv.1} parent=5 // pred_region
        %s341 = ssub.s32 %s13, 2
        // Predicated region
        $region45: #{depthwise_separable_conv.1} parent=43 // pred_check
          %p342 = pneg %p131
        $region46: #{depthwise_separable_conv.1} parent=43 // pred_check_branch
          %344 = sbr.rel (%p342) target = $region48
        $region47: #{depthwise_separable_conv.1} parent=43 // pred_region
          %s345 = sand.u32 %s116, 1
          %s346 = scalar_lea.sflag [#allocation3], %s345
          %s347 = sand.u32 %s116, 1
          %s348 = smul.addr %s347, 16
          %s349 = scalar_lea.vmem [#allocation2], %s348
          %350 = dma.done %s346, 256
        $region48: #{depthwise_separable_conv.1} parent=43 // pred_fallthru
          _
      $region44: #{depthwise_separable_conv.1} parent=5 // pred_fallthru
        _
    $region6: #{depthwise_separable_conv.1} parent=1 // loop_footer
      %s17 = sadd.s32 1, %s13
    $region7: #{depthwise_separable_conv.1} parent=1 // loop_footer_branch
      %12 = sbr.rel target = $region3
    $region8: #{depthwise_separable_conv.1} parent=1 // loop_exit
      _
    %351 = vsyncpa [#allocation3], 1
    %s352 = scalar_lea.sflag [#allocation3], 1
    %353 = vsyncpa %s352, 1

</llo_original>
